<compile_context>
chip_gen: v5e
topology: v5e:2x2
jax: 0.10.0
libtpu: 0.0.40
codegen_flags: <defaults>
</compile_context>

<pallas_src>
import functools

import jax
import jax.numpy as jnp
from jax.experimental import pallas as pl
from jax.experimental.pallas import tpu as pltpu

EPS = 1e-6  # RMSNorm epsilon


def _round_up(a, b):
    return ((a + b - 1) // b) * b


def _cdiv(a, b):
    return (a + b - 1) // b


def _sublane_multiple(dtype):
    # Minimum second-to-last tile multiple for a packed dtype: 8 (f32), 16 (bf16), 32 (int8/fp8).
    return max(8, 32 // jnp.dtype(dtype).itemsize)


def _device_kind():
    try:
        return jax.devices()[0].device_kind.lower()
    except Exception:
        return ""


def _mtp_head_kernel(x_ref, g_ref, w_ref, o_ref, xn_ref):
    # x_ref : (TM, C)   activation row tile
    # g_ref : (1, C)    RMSNorm gamma (resident)
    # w_ref : (TV, C)   head-weight tile in PyTorch nn.Linear layout (vocab rows x n_embd)
    # o_ref : (TM, TV)  logits tile
    # xn_ref: (TM, C)   scratch caching the normalized rows, already in the matmul dtype
    @pl.when(pl.program_id(1) == 0)
    def _():
        x = x_ref[...].astype(jnp.float32)
        ms = jnp.mean(x * x, axis=-1, keepdims=True)
        xn = x * jax.lax.rsqrt(ms + EPS) * g_ref[...].astype(jnp.float32)
        xn_ref[...] = xn.astype(xn_ref.dtype)  # single cast per row tile (not per vocab step)

    # (TM, C) x (TV, C), contracting the last dims -> (TM, TV); accumulate in f32 on the MXU.
    o_ref[...] = jax.lax.dot_general(
        xn_ref[...], w_ref[...], (((1,), (1,)), ((), ())),
        preferred_element_type=jnp.float32,
    ).astype(o_ref.dtype)


@functools.partial(jax.jit, static_argnames=("tm", "tv", "out_dtype"))
def multi_token_prediction_head(x, gamma, head_weight, *, tm=None, tv=512, out_dtype=None):
    """Fused RMSNorm + vocab-projection head.

    x:            (B, T, C)   activations
    gamma:        (C,)        RMSNorm weight
    head_weight:  (V, C)      nn.Linear weight (PyTorch layout, no bias, NOT transposed)
    out_dtype:    logits dtype (default: x.dtype; pass bf16 to halve the writeback)
    returns:      (B, T, V)   logits
    """
    B, T, C = x.shape
    V = head_weight.shape[0]
    rows = B * T
    out_dtype = jnp.dtype(x.dtype if out_dtype is None else out_dtype)

    xb = jnp.dtype(x.dtype).itemsize
    wb = jnp.dtype(head_weight.dtype).itemsize
    ob = out_dtype.itemsize

    kind = _device_kind()
    # v4/v5/v6 have 128 MiB physical VMEM per core; v7x only 64 MiB -> stay conservative there.
    vmem_cap = (100 << 20) if any(s in kind for s in ("v4", "v5", "v6")) else (48 << 20)
    if tm is None:
        # v6e needs large row tiles to amortize the HBM weight re-stream (crossover ~650
        # flops/byte); v5e is already MXU-bound and v7x has 3.2 TB/s HBM, so 512 is enough.
        tm = 1024 if "v6" in kind else 512

    sub = max(_sublane_multiple(x.dtype), _sublane_multiple(head_weight.dtype),
              _sublane_multiple(out_dtype))

    tm_eff = min(tm, _round_up(rows, sub))
    tv_eff = min(tv, _round_up(V, 128))

    def footprint(tm_, tv_):
        # double-buffered x/gamma/w/out blocks + the resident xn scratch (weight dtype)
        return (2 * (tm_ * C * xb + C * 4 + tv_ * C * wb + tm_ * tv_ * ob)
                + tm_ * C * wb)

    # Auto-shrink tiles until the double-buffered footprint fits comfortably in VMEM.
    budget = int(0.85 * vmem_cap)
    while footprint(tm_eff, tv_eff) > budget and (tm_eff > sub or tv_eff > 128):
        if tm_eff >= tv_eff and tm_eff > sub:
            tm_eff = max(sub, _round_up(tm_eff // 2, sub))
        elif tv_eff > 128:
            tv_eff = max(128, _round_up(tv_eff // 2, 128))
        else:
            tm_eff = max(sub, _round_up(tm_eff // 2, sub))

    # Give v7x's two TensorCores (megacore sharding of the "parallel" row axis) >= 2 row tiles.
    if _cdiv(rows, tm_eff) < 2 and rows >= 2 * sub:
        tm_eff = min(tm_eff, _round_up(_cdiv(rows, 2), sub))

    grid = (_cdiv(rows, tm_eff), _cdiv(V, tv_eff))

    x2d = x.reshape(rows, C)
    g2d = gamma.reshape(1, C)

    vmem_limit = int(min(vmem_cap, max(footprint(tm_eff, tv_eff) + (4 << 20), 32 << 20)))

    cost = pl.CostEstimate(
        flops=2 * rows * C * V,
        transcendentals=rows,  # one rsqrt per row
        # the weight is re-streamed from HBM once per row tile
        bytes_accessed=rows * C * xb + grid[0] * V * C * wb + rows * V * ob,
    )

    out = pl.pallas_call(
        _mtp_head_kernel,
        out_shape=jax.ShapeDtypeStruct((rows, V), out_dtype),
        grid_spec=pltpu.PrefetchScalarGridSpec(
            num_scalar_prefetch=0,
            grid=grid,  # vocab axis innermost; xn scratch is reused across it
            in_specs=[
                pl.BlockSpec((tm_eff, C), lambda i, j: (i, 0)),  # activation row tile
                pl.BlockSpec((1, C), lambda i, j: (0, 0)),       # gamma (resident)
                pl.BlockSpec((tv_eff, C), lambda i, j: (j, 0)),  # weight tile, (V, C) layout
            ],
            out_specs=pl.BlockSpec((tm_eff, tv_eff), lambda i, j: (i, j)),
            scratch_shapes=[pltpu.VMEM((tm_eff, C), head_weight.dtype)],
        ),
        compiler_params=pltpu.CompilerParams(
            # vocab axis must be "arbitrary": the xn scratch is reused across j.
            dimension_semantics=("parallel", "arbitrary"),
            vmem_limit_bytes=vmem_limit,
        ),
        cost_estimate=cost,
    )(x2d, g2d, head_weight)

    return out.reshape(B, T, V)


def _reference(x, gamma, head_weight, *, cast_dtype=None):
    xf = x.astype(jnp.float32)
    ms = jnp.mean(xf * xf, axis=-1, keepdims=True)
    xn = xf * jax.lax.rsqrt(ms + EPS) * gamma.astype(jnp.float32)
    if cast_dtype is not None:
        xn = xn.astype(cast_dtype)
    return jnp.einsum("btc,vc->btv", xn, head_weight, preferred_element_type=jnp.float32)


if __name__ == "__main__":
    # Small deterministic setup consistent with the module:
    # batch=2, seq=8, n_embd=32, vocab_size=128
    B, T, C, V = 2, 8, 32, 128
    key = jax.random.PRNGKey(0)
    kx, kw = jax.random.split(key)

    x = jax.random.normal(kx, (B, T, C), dtype=jnp.float32)
    gamma = jnp.ones((C,), dtype=jnp.float32)                         # RMSNorm weight init = ones
    head_w = jax.random.normal(kw, (V, C), dtype=jnp.float32) * 0.02  # nn.Linear weight (V, C)

    logits = jax.block_until_ready(multi_token_prediction_head(x, gamma, head_w))
    ref = _reference(x, gamma, head_w)
    assert logits.shape == (B, T, V)
    assert jnp.allclose(logits, ref, atol=1e-4, rtol=1e-4), "mismatch vs reference (f32)"

    # Ragged shapes (rows % tile != 0, vocab % 128 != 0) -> exercises masked trailing blocks
    # with NO per-call padding of the weight.
    B2, T2, C2, V2 = 2, 5, 32, 200
    x2 = jax.random.normal(jax.random.PRNGKey(1), (B2, T2, C2), dtype=jnp.float32)
    w2 = jax.random.normal(jax.random.PRNGKey(2), (V2, C2), dtype=jnp.float32) * 0.02
    g2 = 1.0 + 0.1 * jax.random.normal(jax.random.PRNGKey(3), (C2,), dtype=jnp.float32)
    out2 = jax.block_until_ready(multi_token_prediction_head(x2, g2, w2))
    ref2 = _reference(x2, g2, w2)
    assert out2.shape == (B2, T2, V2)
    assert jnp.allclose(out2, ref2, atol=1e-4, rtol=1e-4), "mismatch vs reference (ragged)"

    # bf16 weights + bf16 logits: fast MXU path (xn cached in bf16, f32 accumulation).
    w_bf16 = head_w.astype(jnp.bfloat16)
    out3 = jax.block_until_ready(
        multi_token_prediction_head(x, gamma, w_bf16, out_dtype=jnp.bfloat16))
    ref3 = _reference(x, gamma, w_bf16, cast_dtype=jnp.bfloat16)
    assert out3.dtype == jnp.bfloat16
    assert jnp.allclose(out3.astype(jnp.float32), ref3, atol=1e-2, rtol=1e-2), \
        "mismatch vs reference (bf16 fast path)"

    print("KERNEL_OK")
</pallas_src>

<mosaic_0001>
module attributes {stable_mosaic.version = 11 : i64} {
  func.func @_mtp_head_kernel(%arg0: i32, %arg1: i32, %arg2: memref<8x32xf32, #tpu.memory_space<vmem>>, %arg3: memref<1x32xf32, #tpu.memory_space<vmem>>, %arg4: memref<128x32xf32, #tpu.memory_space<vmem>>, %arg5: memref<8x128xf32, #tpu.memory_space<vmem>>, %arg6: memref<8x32xf32, #tpu.memory_space<vmem>>) attributes {dimension_semantics = [#tpu.dimension_semantics<parallel>, #tpu.dimension_semantics<arbitrary>], iteration_bounds = array<i64: 2, 1>, scalar_prefetch = 0 : i64, scratch_operands = 1 : i64, tpu.core_type = #tpu.core_type<tc>, window_params = [{transform_indices = @transform_0, window_bounds = array<i64: 8, 32>}, {pipeline_mode = #tpu.pipeline_mode<synchronous>, transform_indices = @transform_1, window_bounds = array<i64: 1, 32>}, {transform_indices = @transform_2, window_bounds = array<i64: 128, 32>}, {transform_indices = @transform_3, window_bounds = array<i64: 8, 128>}]} {
    %c0_i32 = arith.constant 0 : i32
    %0 = arith.cmpi eq, %arg1, %c0_i32 : i32
    %1 = arith.extui %0 : i1 to i32
    %c0_i32_0 = arith.constant 0 : i32
    %2 = arith.cmpi ne, %1, %c0_i32_0 : i32
    scf.if %2 {
      %c0_6 = arith.constant 0 : index
      %c0_7 = arith.constant 0 : index
      %7 = vector.load %arg2[%c0_6, %c0_7] : memref<8x32xf32, #tpu.memory_space<vmem>>, vector<8x32xf32>
      %8 = arith.mulf %7, %7 : vector<8x32xf32>
      %cst_8 = arith.constant dense<0.000000e+00> : vector<8xf32>
      %9 = vector.multi_reduction <add>, %8, %cst_8 [1] : vector<8x32xf32> to vector<8xf32>
      %10 = vector.shape_cast %9 : vector<8xf32> to vector<8x1xf32>
      %cst_9 = arith.constant 3.200000e+01 : f32
      %11 = vector.broadcast %cst_9 : f32 to vector<8x1xf32>
      %12 = arith.divf %10, %11 : vector<8x1xf32>
      %cst_10 = arith.constant 9.99999997E-7 : f32
      %13 = vector.broadcast %cst_10 : f32 to vector<8x1xf32>
      %14 = arith.addf %12, %13 : vector<8x1xf32>
      %15 = math.rsqrt %14 : vector<8x1xf32>
      %16 = vector.broadcast %15 : vector<8x1xf32> to vector<8x32xf32>
      %17 = arith.mulf %7, %16 : vector<8x32xf32>
      %c0_11 = arith.constant 0 : index
      %c0_12 = arith.constant 0 : index
      %18 = vector.load %arg3[%c0_11, %c0_12] : memref<1x32xf32, #tpu.memory_space<vmem>>, vector<1x32xf32>
      %19 = vector.broadcast %18 : vector<1x32xf32> to vector<8x32xf32>
      %20 = arith.mulf %17, %19 : vector<8x32xf32>
      %c0_13 = arith.constant 0 : index
      %c0_14 = arith.constant 0 : index
      %21 = vector.load %arg6[%c0_13, %c0_14] : memref<8x32xf32, #tpu.memory_space<vmem>>, vector<8x32xf32>
      tpu.vector_store %arg6[%c0_13, %c0_14], %20 {strides = array<i32>} : memref<8x32xf32, #tpu.memory_space<vmem>>, vector<8x32xf32>,
    } else {
    }
    %c0 = arith.constant 0 : index
    %c0_1 = arith.constant 0 : index
    %3 = vector.load %arg6[%c0, %c0_1] : memref<8x32xf32, #tpu.memory_space<vmem>>, vector<8x32xf32>
    %c0_2 = arith.constant 0 : index
    %c0_3 = arith.constant 0 : index
    %4 = vector.load %arg4[%c0_2, %c0_3] : memref<128x32xf32, #tpu.memory_space<vmem>>, vector<128x32xf32>
    %cst = arith.constant dense<0.000000e+00> : vector<8x128xf32>
    %5 = tpu.matmul %3, %4, %cst {dimension_numbers = #tpu.dot_dimension_numbers<[1], [1], [0], [0], [0, 0, 1, 0], [], []>} : vector<8x32xf32>, vector<128x32xf32>, vector<8x128xf32> -> vector<8x128xf32>
    %c0_4 = arith.constant 0 : index
    %c0_5 = arith.constant 0 : index
    %6 = vector.load %arg5[%c0_4, %c0_5] : memref<8x128xf32, #tpu.memory_space<vmem>>, vector<8x128xf32>
    tpu.vector_store %arg5[%c0_4, %c0_5], %5 {strides = array<i32>} : memref<8x128xf32, #tpu.memory_space<vmem>>, vector<8x128xf32>,
    return
  }
  func.func @transform_0(%arg0: i32, %arg1: i32) -> (i32, i32) {
    %c0_i32 = arith.constant 0 : i32
    %c0_i32_0 = arith.constant 0 : i32
    return %arg0, %c0_i32 : i32, i32
  }
  func.func @transform_1(%arg0: i32, %arg1: i32) -> (i32, i32) {
    %c0_i32 = arith.constant 0 : i32
    %c0_i32_0 = arith.constant 0 : i32
    %c0_i32_1 = arith.constant 0 : i32
    return %c0_i32, %c0_i32_0 : i32, i32
  }
  func.func @transform_2(%arg0: i32, %arg1: i32) -> (i32, i32) {
    %c0_i32 = arith.constant 0 : i32
    %c0_i32_0 = arith.constant 0 : i32
    return %arg1, %c0_i32 : i32, i32
  }
  func.func @transform_3(%arg0: i32, %arg1: i32) -> (i32, i32) {
    %c0_i32 = arith.constant 0 : i32
    return %arg0, %arg1 : i32, i32
  }
}

</mosaic_0001>

<llo_original>
// kernel: multi_token_prediction_head.1
$region0: #{multi_token_prediction_head.1}
  #allocation0 [shape = 'u32[]', space=smem, size = 0x4, offset = 0x4, fixed_abs, tag = 'smem constant byte address 0x4 - core index']
  #allocation1 [shape = 'u32[72,128]{1,0:T(1,128)}', space=vmem, size = 0x9000, scoped, tag = 'internal scratch']
  #allocation2 [shape = 'f32[8,32]{1,0:T(8,128)}', space=vmem, size = 0x1000, scoped, tag = 'scratch operand']
  %s0 = inlined_call_operand.vmem [shape: f32[16,32], index: 0, kind: input, shape index: {}]
  %s1 = inlined_call_operand.vmem [shape: f32[1,32], index: 1, kind: input, shape index: {}]
  %s2 = inlined_call_operand.vmem [shape: f32[128,32], index: 2, kind: input, shape index: {}]
  %s3 = inlined_call_operand.hbm [shape: f32[16,128], index: 3, kind: output, shape index: {}]
  %s4 = sld [smem:[#allocation0]]
  $region49: #{multi_token_prediction_head.1} parent=0
    _
  %s6 = ssub.s32 1, %s4
  %s7 = scalar_select 0, %s6, %s4
  $region1: #{multi_token_prediction_head.1} parent=0
    #allocation3 [shape = 'u8[8192]{0}', space=vmem, size = 0x2000, scoped, tag = 'output window, operand 0']
    #allocation4 [shape = 's32[2]{0}', space=sflag, size = 0x8, scoped, tag = 'scoped memory for multi_token_prediction_head.1']
    %8 = vsyncpa [#allocation4], 0
    %s9 = scalar_lea.sflag [#allocation4], 1
    %10 = vsyncpa %s9, 0
    loop: start=0, step=1, limit=4
    $region2: #{multi_token_prediction_head.1} parent=1 // loop_pre_header
      _
    $region3: #{multi_token_prediction_head.1} parent=1 // loop_header
      %s12 = sphi 0, %s16
      %p13 = scmp.ge.s32.totalorder %s12, 4
      %s19 = sphi 0, %s31
      %s20 = sphi 0, %s27
      %s21 = sphi 0, %s19
      %s22 = sphi 0, %s20
      %s23 = sphi 0, %s21
      %s24 = sphi 0, %s22
      %s34 = sphi 0, %s36
      %s37 = sphi 0, %s34
      %s38 = sphi 0, %s37
      %s54 = sphi 0, %s38
      %s58 = sphi 0, %s58
      %s60 = sphi 0, %s58
      %s61 = sphi 0, %s60
      %s75 = sphi 0, %s61
      %s81 = sphi 0, %s83
      %s84 = sphi 0, %s81
      %s85 = sphi 0, %s84
      %s101 = sphi 0, %s85
      %s109 = sphi 0, %s111
      %s112 = sphi 0, %s109
      %s113 = sphi 0, %s112
      %s129 = sphi 0, %s113
    $region4: #{multi_token_prediction_head.1} parent=1 // loop_header_branch
      %15 = sbr.rel (%p13) target = $region8
    $region5: #{multi_token_prediction_head.1} parent=1 // loop_body
      %s17 = ssub.s32 %s12, 1
      %s18 = ssub.s32 %s12, 2
      %s25 = sadd.s32 1, %s20
      %p26 = scmp.ge.s32.totalorder %s25, 1
      %s27 = scalar_select %p26, 0, %s25
      %s28 = sadd.s32 1, %s19
      %s29 = scalar_select %p26, %s28, %s19
      %p30 = scmp.ge.s32.totalorder %s29, 2
      %s31 = scalar_select %p30, 0, %s29
      %s32 = ssub.s32 %s19, %s31
      %p33 = scmp.eq.s32.totalorder %s32, 0
      %s35 = sadd.s32 %s34, 1
      %s36 = scalar_select %p33, %s34, %s35
      %p39 = pneg %p33
      %p40 = scmp.eq.s32.totalorder %s12, 1
      %p41 = por %p39, %p40
      %p42 = scmp.ne.s32.totalorder %s34, %s37
      %p43 = scmp.eq.s32.totalorder %s12, 0
      %p44 = por %p42, %p43
      %p45 = scmp.ne.s32.totalorder %s34, %s37
      %p46 = scmp.eq.s32.totalorder %s17, 1
      %p47 = por %p45, %p46
      %p48 = scmp.ne.s32.totalorder %s37, %s38
      %p49 = scmp.eq.s32.totalorder %s17, 0
      %p50 = por %p48, %p49
      %p51 = scmp.ne.s32.totalorder %s37, %s38
      %p52 = scmp.eq.s32.totalorder %s18, 1
      %p53 = por %p51, %p52
      %p55 = scmp.ne.s32.totalorder %s38, %s54
      %p56 = scmp.eq.s32.totalorder %s18, 0
      %p57 = por %p55, %p56
      %s59 = sadd.s32 %s58, 1
      %p62 = scmp.eq.s32.totalorder %s12, 1
      %p63 = scmp.ne.s32.totalorder %s58, %s60
      %p64 = scmp.eq.s32.totalorder %s12, 0
      %p65 = por %p63, %p64
      %p66 = scmp.ne.s32.totalorder %s58, %s60
      %p67 = scmp.eq.s32.totalorder %s17, 1
      %p68 = por %p66, %p67
      %p69 = scmp.ne.s32.totalorder %s60, %s61
      %p70 = scmp.eq.s32.totalorder %s17, 0
      %p71 = por %p69, %p70
      %p72 = scmp.ne.s32.totalorder %s60, %s61
      %p73 = scmp.eq.s32.totalorder %s18, 1
      %p74 = por %p72, %p73
      %p76 = scmp.ne.s32.totalorder %s61, %s75
      %p77 = scmp.eq.s32.totalorder %s18, 0
      %p78 = por %p76, %p77
      %s79 = ssub.s32 %s20, %s27
      %p80 = scmp.eq.s32.totalorder %s79, 0
      %s82 = sadd.s32 %s81, 1
      %s83 = scalar_select %p80, %s81, %s82
      %p86 = pneg %p80
      %p87 = scmp.eq.s32.totalorder %s12, 1
      %p88 = por %p86, %p87
      %p89 = scmp.ne.s32.totalorder %s81, %s84
      %p90 = scmp.eq.s32.totalorder %s12, 0
      %p91 = por %p89, %p90
      %p92 = scmp.ne.s32.totalorder %s81, %s84
      %p93 = scmp.eq.s32.totalorder %s17, 1
      %p94 = por %p92, %p93
      %p95 = scmp.ne.s32.totalorder %s84, %s85
      %p96 = scmp.eq.s32.totalorder %s17, 0
      %p97 = por %p95, %p96
      %p98 = scmp.ne.s32.totalorder %s84, %s85
      %p99 = scmp.eq.s32.totalorder %s18, 1
      %p100 = por %p98, %p99
      %p102 = scmp.ne.s32.totalorder %s85, %s101
      %p103 = scmp.eq.s32.totalorder %s18, 0
      %p104 = por %p102, %p103
      %s105 = ssub.s32 %s19, %s31
      %s106 = ssub.s32 %s20, %s27
      %s107 = sor.u32 %s105, %s106
      %p108 = scmp.eq.s32.totalorder %s107, 0
      %s110 = sadd.s32 %s109, 1
      %s111 = scalar_select %p108, %s109, %s110
      %p114 = pneg %p108
      %p115 = scmp.eq.s32.totalorder %s12, 1
      %p116 = por %p114, %p115
      %p117 = scmp.ne.s32.totalorder %s109, %s112
      %p118 = scmp.eq.s32.totalorder %s12, 0
      %p119 = por %p117, %p118
      %p120 = scmp.ne.s32.totalorder %s109, %s112
      %p121 = scmp.eq.s32.totalorder %s17, 1
      %p122 = por %p120, %p121
      %p123 = scmp.ne.s32.totalorder %s112, %s113
      %p124 = scmp.eq.s32.totalorder %s17, 0
      %p125 = por %p123, %p124
      %p126 = scmp.ne.s32.totalorder %s112, %s113
      %p127 = scmp.eq.s32.totalorder %s18, 1
      %p128 = por %p126, %p127
      %p130 = scmp.ne.s32.totalorder %s113, %s129
      %p131 = scmp.eq.s32.totalorder %s18, 0
      %p132 = por %p130, %p131
      %p133 = scmp.le.s32.totalorder 1, %s12
      %p134 = scmp.lt.s32.totalorder %s12, 3
      %p135 = pnand %p133, %p134
      %p136 = pneg %p135
      // Predicated region
      $region9: #{multi_token_prediction_head.1} parent=5 // pred_check
        _
      $region10: #{multi_token_prediction_head.1} parent=5 // pred_check_branch
        %138 = sbr.rel (%p135) target = $region12
      $region11: #{multi_token_prediction_head.1} parent=5 // pred_region
        %s139 = ssub.s32 %s12, 1
        // Predicated region
        $region13: #{multi_token_prediction_head.1} parent=11 // pred_check
          %p140 = pneg %p71
        $region14: #{multi_token_prediction_head.1} parent=11 // pred_check_branch
          %142 = sbr.rel (%p140) target = $region16
        $region15: #{multi_token_prediction_head.1} parent=11 // pred_region
          _
        $region16: #{multi_token_prediction_head.1} parent=11 // pred_fallthru
          _
        // Predicated region
        $region17: #{multi_token_prediction_head.1} parent=11 // pred_check
          %p143 = pneg %p97
        $region18: #{multi_token_prediction_head.1} parent=11 // pred_check_branch
          %145 = sbr.rel (%p143) target = $region20
        $region19: #{multi_token_prediction_head.1} parent=11 // pred_region
          %s146 = smul.u32 16, %s22
          %p147 = scmp.lt.s32.totalorder %s146, 15
          %s148 = scalar_select %p147, %s146, 15
          %s149 = smul.addr %s148, 8
          %s150 = scalar_lea.vmem %s2, %s149
          %s151 = smul.u32 16, %s22
        $region20: #{multi_token_prediction_head.1} parent=11 // pred_fallthru
          _
      $region12: #{multi_token_prediction_head.1} parent=5 // pred_fallthru
        _
      %p152 = scmp.lt.s32.totalorder %s12, 2
      // Predicated region
      $region21: #{multi_token_prediction_head.1} parent=5 // pred_check
        %p153 = pneg %p152
      $region22: #{multi_token_prediction_head.1} parent=5 // pred_check_branch
        %155 = sbr.rel (%p153) target = $region24
      $region23: #{multi_token_prediction_head.1} parent=5 // pred_region
        // Predicated region
        $region25: #{multi_token_prediction_head.1} parent=23 // pred_check
          %p156 = pneg %p44
        $region26: #{multi_token_prediction_head.1} parent=23 // pred_check_branch
          %158 = sbr.rel (%p156) target = $region28
        $region27: #{multi_token_prediction_head.1} parent=23 // pred_region
          %p159 = scmp.lt.s32.totalorder %s19, 1
          %s160 = scalar_select %p159, %s19, 1
          %s161 = smul.addr %s160, 8
          %s162 = scalar_lea.vmem %s0, %s161
        $region28: #{multi_token_prediction_head.1} parent=23 // pred_fallthru
          _
      $region24: #{multi_token_prediction_head.1} parent=5 // pred_fallthru
        _
      %p163 = scmp.le.s32.totalorder 1, %s12
      %p164 = scmp.lt.s32.totalorder %s12, 3
      %p165 = pnand %p163, %p164
      %p166 = pneg %p165
      // Predicated region
      $region29: #{multi_token_prediction_head.1} parent=5 // pred_check
        _
      $region30: #{multi_token_prediction_head.1} parent=5 // pred_check_branch
        %168 = sbr.rel (%p165) target = $region32
      $region31: #{multi_token_prediction_head.1} parent=5 // pred_region
        %s169 = ssub.s32 %s12, 1
        %p170 = scmp.lt.s32.totalorder %s21, 1
        %s171 = scalar_select %p170, %s21, 1
        %s172 = smul.addr %s171, 8
        %s173 = scalar_lea.vmem %s0, %s172
        %p174 = pneg %p50
        %p175 = pneg %p47
        %p176 = pneg %p71
        %p177 = pneg %p68
        %s178 = smul.u32 16, %s22
        %p179 = scmp.lt.s32.totalorder %s178, 15
        %s180 = scalar_select %p179, %s178, 15
        %s181 = smul.addr %s180, 8
        %s182 = scalar_lea.vmem %s2, %s181
        %p183 = pneg %p97
        %p184 = pneg %p94
        %p185 = pneg %p125
        %p186 = pneg %p122
        %s187 = sand.u32 %s112, 1
        %s188 = scalar_lea.sflag [#allocation4], %s187
        %s189 = sand.u32 %s112, 1
        %s190 = smul.addr %s189, 8
        %s191 = scalar_lea.vmem [#allocation3], %s190
        %p192 = scmp.lt.s32.totalorder %s21, 1
        %s193 = scalar_select %p192, %s21, 1
        %s194 = smul.addr %s193, 8
        %s195 = scalar_lea.vmem %s0, %s194
        %s196 = smul.u32 16, %s22
        %p197 = scmp.lt.s32.totalorder %s196, 15
        %s198 = scalar_select %p197, %s196, 15
        %s199 = smul.addr %s198, 8
        %s200 = scalar_lea.vmem %s2, %s199
        %s201 = smul.u32 16, %s22
        %p202 = scmp.eq.s32.totalorder %s22, 0
        // Predicated region
        $region33: #{multi_token_prediction_head.1} parent=31 // pred_check
          %p203 = pneg %p202
        $region34: #{multi_token_prediction_head.1} parent=31 // pred_check_branch
          %205 = sbr.rel (%p203) target = $region36
        $region35: #{multi_token_prediction_head.1} parent=31 // pred_region
          %v206 = vld [vmem:[%s195] sm:$0xff]
          %v207 = vmul.f32 %v206, %v206
          %vm208 = vcmask 261120
          %v209 = vsel %vm208, %v207, 0.0
          %210 = vadd.xlane.f32.xlu0 %v209
          %v211 = vpop.xlane.xlu0 %210
          %v212 = vrcp.pop 32.0
          %v213 = vmul.f32 32.0, %v212
          %v214 = vsub.f32 1.0, %v213
          %v215 = vmul.f32 %v212, %v214
          %v216 = vadd.f32 %v212, %v215
          %vm217 = vweird.f32 %v212
          %v218 = vsel %vm217, %v212, %v216
          %v219 = vmul.f32 %v211, %v218
          %v220 = vadd.f32 %v219, 1e-06
          %v221 = vrsqrt.pop %v220
          %v222 = vmul.f32 %v221, %v220
          %v223 = vmul.f32 %v222, %v221
          %v224 = vmul.f32 0.5, %v223
          %v225 = vsub.f32 1.5, %v224
          %v226 = vmul.f32 %v221, %v225
          %vm227 = vweird.f32 %v220
          %vm228 = vweird.f32 %v221
          %vm229 = vmor %vm227, %vm228
          %v230 = vsel %vm229, %v221, %v226
          %v231 = vmul.f32 %v206, %v230
          %v232 = vld [vmem:[%s1] sm:$0x1]
          %v234 = vperm.slane %v232, 0
          %v236 = vmul.f32 %v231, %v234
          %237 = vst.msk [vmem:[#allocation2] sm:$0xff] %vm208, %v236
        $region36: #{multi_token_prediction_head.1} parent=31 // pred_fallthru
          _
        %v238 = vld [vmem:[#allocation2] sm:$0xff]
        %v239 = vld [vmem:[%s200] sm:$0xff]
        %v240 = vld [vmem:[%s200 + $0x8] sm:$0xff]
        %v241 = vld [vmem:[%s200 + $0x10] sm:$0xff]
        %v242 = vld [vmem:[%s200 + $0x18] sm:$0xff]
        %v243 = vld [vmem:[%s200 + $0x20] sm:$0xff]
        %v244 = vld [vmem:[%s200 + $0x28] sm:$0xff]
        %v245 = vld [vmem:[%s200 + $0x30] sm:$0xff]
        %v246 = vld [vmem:[%s200 + $0x38] sm:$0xff]
        %v247 = vld [vmem:[%s200 + $0x40] sm:$0xff]
        %v248 = vld [vmem:[%s200 + $0x48] sm:$0xff]
        %v249 = vld [vmem:[%s200 + $0x50] sm:$0xff]
        %v250 = vld [vmem:[%s200 + $0x58] sm:$0xff]
        %v251 = vld [vmem:[%s200 + $0x60] sm:$0xff]
        %v252 = vld [vmem:[%s200 + $0x68] sm:$0xff]
        %v253 = vld [vmem:[%s200 + $0x70] sm:$0xff]
        %v254 = vld [vmem:[%s200 + $0x78] sm:$0xff]
        %vm255 = vcmask 261120
        %v257 = vsel %vm255, %v238, 0
        %v260 = vsel %vm255, %v239, 0
        %v263 = vsel %vm255, %v240, 0
        %v266 = vsel %vm255, %v241, 0
        %v269 = vsel %vm255, %v242, 0
        %v272 = vsel %vm255, %v243, 0
        %v275 = vsel %vm255, %v244, 0
        %v278 = vsel %vm255, %v245, 0
        %v281 = vsel %vm255, %v246, 0
        %v284 = vsel %vm255, %v247, 0
        %v287 = vsel %vm255, %v248, 0
        %v290 = vsel %vm255, %v249, 0
        %v293 = vsel %vm255, %v250, 0
        %v296 = vsel %vm255, %v251, 0
        %v299 = vsel %vm255, %v252, 0
        %v302 = vsel %vm255, %v253, 0
        %v305 = vsel %vm255, %v254, 0
        %307 = vmatpush.xpose.msra.mxu0 %v305
        %308 = vmatpush.xpose.msra.mxu0 %v302
        %309 = vmatpush.xpose.msra.mxu0 %v299
        %310 = vmatpush.xpose.msra.mxu0 %v296
        %311 = vmatpush.xpose.msra.mxu0 %v293
        %312 = vmatpush.xpose.msra.mxu0 %v290
        %313 = vmatpush.xpose.msra.mxu0 %v287
        %314 = vmatpush.xpose.msra.mxu0 %v284
        %315 = vmatpush.xpose.msra.mxu0 %v281
        %316 = vmatpush.xpose.msra.mxu0 %v278
        %317 = vmatpush.xpose.msra.mxu0 %v275
        %318 = vmatpush.xpose.msra.mxu0 %v272
        %319 = vmatpush.xpose.msra.mxu0 %v269
        %320 = vmatpush.xpose.msra.mxu0 %v266
        %321 = vmatpush.xpose.msra.mxu0 %v263
        %322 = vmatpush.xpose.msra.mxu0 %v260
        %323 = vmatmul.f32.gmra.mxu0 %v257
        %v324 = vpop.f32.mrf.mxu0
        %v325 = vadd.f32 0.0, %v324
        %326 = vdwg.mxu0
        %327 = vst [vmem:[%s191] sm:$0xff] %v325
        %s328 = sand.u32 %s112, 1
        %s329 = scalar_lea.sflag [#allocation4], %s328
        %s330 = sand.u32 %s112, 1
        %s331 = smul.addr %s330, 8
        %s332 = scalar_lea.vmem [#allocation3], %s331
        // Predicated region
        $region37: #{multi_token_prediction_head.1} parent=31 // pred_check
          %p333 = pneg %p122
        $region38: #{multi_token_prediction_head.1} parent=31 // pred_check_branch
          %335 = sbr.rel (%p333) target = $region40
        $region39: #{multi_token_prediction_head.1} parent=31 // pred_region
          %337 = vsyncadd %s329, 0
          %s338 = sadd.s32 %s22, %s21
          %s339 = smul.addr %s338, 8
          %s340 = scalar_lea.hbm %s3, %s339
          %s342 = sshll.u32 %s332, 4
          %s343 = int_to_ptr.vmem [resolvable:$true] %s342
          %s344 = sshll.u32 %s340, 4
          %s345 = int_to_ptr.hbm [resolvable:$true] %s344
          %347 = dma.vmem_to_hbm [thread:$0]  %s343, 128, %s345, %s329
        $region40: #{multi_token_prediction_head.1} parent=31 // pred_fallthru
          _
      $region32: #{multi_token_prediction_head.1} parent=5 // pred_fallthru
        _
      %p348 = scmp.le.s32.totalorder 2, %s12
      // Predicated region
      $region41: #{multi_token_prediction_head.1} parent=5 // pred_check
        %p349 = pneg %p348
      $region42: #{multi_token_prediction_head.1} parent=5 // pred_check_branch
        %351 = sbr.rel (%p349) target = $region44
      $region43: #{multi_token_prediction_head.1} parent=5 // pred_region
        %s352 = ssub.s32 %s12, 2
        // Predicated region
        $region45: #{multi_token_prediction_head.1} parent=43 // pred_check
          %p353 = pneg %p128
        $region46: #{multi_token_prediction_head.1} parent=43 // pred_check_branch
          %355 = sbr.rel (%p353) target = $region48
        $region47: #{multi_token_prediction_head.1} parent=43 // pred_region
          %s356 = sand.u32 %s113, 1
          %s357 = scalar_lea.sflag [#allocation4], %s356
          %s358 = sand.u32 %s113, 1
          %s359 = smul.addr %s358, 8
          %s360 = scalar_lea.vmem [#allocation3], %s359
          %362 = dma.done %s357, 128
        $region48: #{multi_token_prediction_head.1} parent=43 // pred_fallthru
          _
      $region44: #{multi_token_prediction_head.1} parent=5 // pred_fallthru
        _
    $region6: #{multi_token_prediction_head.1} parent=1 // loop_footer
      %s16 = sadd.s32 1, %s12
    $region7: #{multi_token_prediction_head.1} parent=1 // loop_footer_branch
      %11 = sbr.rel target = $region3
    $region8: #{multi_token_prediction_head.1} parent=1 // loop_exit
      _
    %363 = vsyncpa [#allocation4], 1
    %s364 = scalar_lea.sflag [#allocation4], 1
    %365 = vsyncpa %s364, 1

</llo_original>
